<compile_context>
chip_gen: v7x
topology: tpu7x:2x2x1
jax: 0.10.0
libtpu: 0.0.40
codegen_flags: <defaults>
</compile_context>

<pallas_src>
import functools
import math

import jax
import jax.numpy as jnp
import numpy as np
from jax.experimental import pallas as pl
from jax.experimental.pallas import tpu as pltpu


def _pe2d_kernel(half, dc, factor_ref, phase_ref, posw_ref, posh_ref, o_ref):
    """One channel-block of the 2D sin/cos positional encoding.

    factor_ref, phase_ref : (dc, 1)  per-channel div_term / sin-vs-cos phase
    posw_ref, posh_ref    : (1, HW)  flattened w / h position index (f32)
    o_ref                 : (dc, HW) output block (lane-dense last dim)

    pe[c, p] = sin(pos[c, p] * factor[c] + phase[c]),
               pos = w-index if c < half else h-index.
    """
    c0 = pl.program_id(0) * dc
    c = c0 + jax.lax.broadcasted_iota(jnp.int32, (dc, 1), 0)
    is_w_half = c < half                                        # (dc, 1) mask
    # Pure VPU select between the two small position vectors (broadcasts to
    # (dc, HW)); the only EUP work is the single sin below.
    pos = jnp.where(is_w_half, posw_ref[...], posh_ref[...])
    o_ref[...] = jnp.sin(pos * factor_ref[...] + phase_ref[...])


def _pick_channel_block(d_model: int, hw: int) -> int:
    """Largest channel block that is a multiple of 8, divides d_model, is
    <= 128 channels and keeps the f32 output block near/below ~1 MiB."""
    if d_model % 8 != 0:
        return d_model                  # full extent is always a legal block
    dc = max(8, min(d_model, 128, (1 << 20) // (4 * hw)))
    dc -= dc % 8
    dc = max(dc, 8)
    while d_model % dc != 0:
        dc -= 8
    return dc


def positional_encoding_2d(d_model: int, height: int, width: int) -> jax.Array:
    """JAX/Pallas equivalent of MultiHeadAttention.positional_encoding_2d."""
    if d_model % 4 != 0:
        raise ValueError(
            "Cannot use sin/cos positional encoding with odd dimension "
            f"(got dim={d_model})"
        )
    half = d_model // 2
    hw = height * width

    # ---- tiny per-channel / per-position tables, precomputed on host -------
    c = np.arange(d_model)
    cc = np.where(c < half, c, c - half)            # channel index within half
    k2 = (cc & ~1).astype(np.float64)               # 2*k  ~ arange(0, half, 2)
    factor = np.exp(k2 * -(math.log(10000.0) / half)).astype(np.float32)
    phase = (cc & 1).astype(np.float32) * np.float32(math.pi / 2)  # 0->sin, pi/2->cos
    p = np.arange(hw)
    pos_w = (p % width).astype(np.float32)
    pos_h = (p // width).astype(np.float32)

    factor = jnp.asarray(factor.reshape(d_model, 1))
    phase = jnp.asarray(phase.reshape(d_model, 1))
    pos_w = jnp.asarray(pos_w.reshape(1, hw))
    pos_h = jnp.asarray(pos_h.reshape(1, hw))

    dc = _pick_channel_block(d_model, hw)
    grid = (d_model // dc,)

    pe_flat = pl.pallas_call(
        functools.partial(_pe2d_kernel, half, dc),
        out_shape=jax.ShapeDtypeStruct((d_model, hw), jnp.float32),
        grid=grid,
        in_specs=[
            pl.BlockSpec((dc, 1), lambda i: (i, 0)),    # factor (per-channel)
            pl.BlockSpec((dc, 1), lambda i: (i, 0)),    # phase  (per-channel)
            pl.BlockSpec((1, hw), lambda i: (0, 0)),    # pos_w  (same block every step)
            pl.BlockSpec((1, hw), lambda i: (0, 0)),    # pos_h  (same block every step)
        ],
        out_specs=pl.BlockSpec((dc, hw), lambda i: (i, 0)),
        compiler_params=pltpu.CompilerParams(
            dimension_semantics=("parallel",),
        ),
    )(factor, phase, pos_w, pos_h)

    # Row-major compatible reshape: free (no data movement); keeps the kernel's
    # stores lane-dense while the caller gets the PyTorch (D, H, W) layout.
    return pe_flat.reshape(d_model, height, width)


def _reference_pe2d(d_model: int, height: int, width: int) -> np.ndarray:
    """Pure-NumPy transcription of the PyTorch method, for verification."""
    pe = np.zeros((d_model, height, width), dtype=np.float32)
    half = d_model // 2
    div_term = np.exp(np.arange(0.0, half, 2) * -(math.log(10000.0) / half))
    pos_w = np.arange(0.0, width)[:, None]
    pos_h = np.arange(0.0, height)[:, None]
    pe[0:half:2, :, :] = np.repeat(
        np.sin(pos_w * div_term).T[:, None, :], height, axis=1
    )
    pe[1:half:2, :, :] = np.repeat(
        np.cos(pos_w * div_term).T[:, None, :], height, axis=1
    )
    pe[half::2, :, :] = np.repeat(
        np.sin(pos_h * div_term).T[:, :, None], width, axis=2
    )
    pe[half + 1::2, :, :] = np.repeat(
        np.cos(pos_h * div_term).T[:, :, None], width, axis=2
    )
    return pe.astype(np.float32)


if __name__ == "__main__":
    key = jax.random.PRNGKey(0)
    # Feature map entering MultiHeadSelfAttention in a small N2VT:
    # n_feat=4 -> 8*n_feat=32 channels; a 128x128 input becomes 16x16 after 3 downs.
    x = jax.random.normal(key, (2, 32, 16, 16), dtype=jnp.float32)
    B, C, H, W = x.shape

    pe = jax.block_until_ready(positional_encoding_2d(C, H, W))
    np.testing.assert_allclose(
        np.asarray(pe), _reference_pe2d(C, H, W), rtol=1e-5, atol=1e-5
    )
    assert pe.shape == (C, H, W) and pe.dtype == jnp.float32

    # Second config exercises the multi-step channel-parallel grid
    # (d_model=256 -> dc=128, grid=(2,)).
    pe2 = jax.block_until_ready(positional_encoding_2d(256, 16, 16))
    np.testing.assert_allclose(
        np.asarray(pe2), _reference_pe2d(256, 16, 16), rtol=1e-5, atol=1e-5
    )

    print("KERNEL_OK")
</pallas_src>

<mosaic_0001>
module attributes {stable_mosaic.version = 11 : i64} {
  func.func @_pe2d_kernel(%arg0: i32, %arg1: memref<32x1xf32, #tpu.memory_space<vmem>>, %arg2: memref<32x1xf32, #tpu.memory_space<vmem>>, %arg3: memref<1x256xf32, #tpu.memory_space<vmem>>, %arg4: memref<1x256xf32, #tpu.memory_space<vmem>>, %arg5: memref<32x256xf32, #tpu.memory_space<vmem>>) attributes {dimension_semantics = [#tpu.dimension_semantics<parallel>], iteration_bounds = array<i64: 1>, scalar_prefetch = 0 : i64, scratch_operands = 0 : i64, tpu.core_type = #tpu.core_type<tc>, window_params = [{transform_indices = @transform_0, window_bounds = array<i64: 32, 1>}, {transform_indices = @transform_1, window_bounds = array<i64: 32, 1>}, {pipeline_mode = #tpu.pipeline_mode<synchronous>, transform_indices = @transform_2, window_bounds = array<i64: 1, 256>}, {pipeline_mode = #tpu.pipeline_mode<synchronous>, transform_indices = @transform_3, window_bounds = array<i64: 1, 256>}, {transform_indices = @transform_4, window_bounds = array<i64: 32, 256>}]} {
    %c32_i32 = arith.constant 32 : i32
    %0 = arith.muli %arg0, %c32_i32 : i32
    %1 = tpu.iota {dimensions = array<i32: 0>} : vector<32x1xi32>
    %2 = vector.broadcast %0 : i32 to vector<32x1xi32>
    %3 = arith.addi %2, %1 : vector<32x1xi32>
    %c16_i32 = arith.constant 16 : i32
    %4 = vector.broadcast %c16_i32 : i32 to vector<32x1xi32>
    %5 = arith.cmpi slt, %3, %4 : vector<32x1xi32>
    %c0 = arith.constant 0 : index
    %c0_0 = arith.constant 0 : index
    %6 = vector.load %arg3[%c0, %c0_0] : memref<1x256xf32, #tpu.memory_space<vmem>>, vector<1x256xf32>
    %c0_1 = arith.constant 0 : index
    %c0_2 = arith.constant 0 : index
    %7 = vector.load %arg4[%c0_1, %c0_2] : memref<1x256xf32, #tpu.memory_space<vmem>>, vector<1x256xf32>
    %8 = vector.shape_cast %5 : vector<32x1xi1> to vector<32x1xi1>
    %9 = vector.broadcast %8 : vector<32x1xi1> to vector<32x256xi1>
    %10 = vector.shape_cast %6 : vector<1x256xf32> to vector<1x256xf32>
    %11 = vector.broadcast %10 : vector<1x256xf32> to vector<32x256xf32>
    %12 = vector.shape_cast %7 : vector<1x256xf32> to vector<1x256xf32>
    %13 = vector.broadcast %12 : vector<1x256xf32> to vector<32x256xf32>
    %14 = arith.select %9, %11, %13 : vector<32x256xi1>, vector<32x256xf32>
    %c0_3 = arith.constant 0 : index
    %c0_4 = arith.constant 0 : index
    %15 = vector.load %arg1[%c0_3, %c0_4] : memref<32x1xf32, #tpu.memory_space<vmem>>, vector<32x1xf32>
    %16 = vector.broadcast %15 : vector<32x1xf32> to vector<32x256xf32>
    %17 = arith.mulf %14, %16 : vector<32x256xf32>
    %c0_5 = arith.constant 0 : index
    %c0_6 = arith.constant 0 : index
    %18 = vector.load %arg2[%c0_5, %c0_6] : memref<32x1xf32, #tpu.memory_space<vmem>>, vector<32x1xf32>
    %19 = vector.broadcast %18 : vector<32x1xf32> to vector<32x256xf32>
    %20 = arith.addf %17, %19 : vector<32x256xf32>
    %21 = math.sin %20 : vector<32x256xf32>
    %c0_7 = arith.constant 0 : index
    %c0_8 = arith.constant 0 : index
    %22 = vector.load %arg5[%c0_7, %c0_8] : memref<32x256xf32, #tpu.memory_space<vmem>>, vector<32x256xf32>
    tpu.vector_store %arg5[%c0_7, %c0_8], %21 {strides = array<i32>} : memref<32x256xf32, #tpu.memory_space<vmem>>, vector<32x256xf32>,
    return
  }
  func.func @transform_0(%arg0: i32) -> (i32, i32) {
    %c0_i32 = arith.constant 0 : i32
    %c0_i32_0 = arith.constant 0 : i32
    return %arg0, %c0_i32 : i32, i32
  }
  func.func @transform_1(%arg0: i32) -> (i32, i32) {
    %c0_i32 = arith.constant 0 : i32
    %c0_i32_0 = arith.constant 0 : i32
    return %arg0, %c0_i32 : i32, i32
  }
  func.func @transform_2(%arg0: i32) -> (i32, i32) {
    %c0_i32 = arith.constant 0 : i32
    %c0_i32_0 = arith.constant 0 : i32
    %c0_i32_1 = arith.constant 0 : i32
    return %c0_i32, %c0_i32_0 : i32, i32
  }
  func.func @transform_3(%arg0: i32) -> (i32, i32) {
    %c0_i32 = arith.constant 0 : i32
    %c0_i32_0 = arith.constant 0 : i32
    %c0_i32_1 = arith.constant 0 : i32
    return %c0_i32, %c0_i32_0 : i32, i32
  }
  func.func @transform_4(%arg0: i32) -> (i32, i32) {
    %c0_i32 = arith.constant 0 : i32
    %c0_i32_0 = arith.constant 0 : i32
    return %arg0, %c0_i32 : i32, i32
  }
}

</mosaic_0001>

<llo_original>
// kernel: tpu_custom_call.1
$region0: #{tpu_custom_call.1}
  #allocation0 [shape = 'u32[]', space=smem, size = 0x4, offset = 0x4, fixed_abs, tag = 'smem constant byte address 0x4 - core index']
  #allocation1 [shape = 'u32[144,128]{1,0:T(1,128)}', space=vmem, size = 0x12000, scoped, tag = 'internal scratch']
  %s0 = inlined_call_operand.vmem [shape: f32[32,1], index: 0, kind: input, shape index: {}]
  %s1 = inlined_call_operand.vmem [shape: f32[32,1], index: 1, kind: input, shape index: {}]
  %s2 = inlined_call_operand.vmem [shape: f32[1,256], index: 2, kind: input, shape index: {}]
  %s3 = inlined_call_operand.vmem [shape: f32[1,256], index: 3, kind: input, shape index: {}]
  %s4 = inlined_call_operand.hbm [shape: f32[32,256], index: 4, kind: output, shape index: {}]
  %s5 = sld [smem:[#allocation0]]
  $region26: #{tpu_custom_call.1} parent=0
    _
  %s7 = ssub.s32 1, %s5
  %s8 = scalar_select 0, %s7, %s5
  $region1: #{tpu_custom_call.1} parent=0
    #allocation2 [shape = 'u8[32768]{0}', space=vmem, size = 0x8000, scoped, tag = 'output window, operand 0, single buffered']
    #allocation3 [shape = 's32[1]{0}', space=sflag, size = 0x4, scoped, tag = 'scoped memory for tpu_custom_call.1']
    %9 = vsyncpa [#allocation3], 0
    // Predicated region
    $region2: #{tpu_custom_call.1} parent=1 // pred_check
      _
    $region3: #{tpu_custom_call.1} parent=1 // pred_check_branch
      %11 = sbr.rel (0) target = $region5
    $region4: #{tpu_custom_call.1} parent=1 // pred_region
      _
    $region5: #{tpu_custom_call.1} parent=1 // pred_fallthru
      _
    // Predicated region
    $region6: #{tpu_custom_call.1} parent=1 // pred_check
      _
    $region7: #{tpu_custom_call.1} parent=1 // pred_check_branch
      %13 = sbr.rel (0) target = $region9
    $region8: #{tpu_custom_call.1} parent=1 // pred_region
      _
    $region9: #{tpu_custom_call.1} parent=1 // pred_fallthru
      _
    // Predicated region
    $region10: #{tpu_custom_call.1} parent=1 // pred_check
      _
    $region11: #{tpu_custom_call.1} parent=1 // pred_check_branch
      %15 = sbr.rel (0) target = $region13
    $region12: #{tpu_custom_call.1} parent=1 // pred_region
      _
    $region13: #{tpu_custom_call.1} parent=1 // pred_fallthru
      _
    // Predicated region
    $region14: #{tpu_custom_call.1} parent=1 // pred_check
      _
    $region15: #{tpu_custom_call.1} parent=1 // pred_check_branch
      %17 = sbr.rel (0) target = $region17
    $region16: #{tpu_custom_call.1} parent=1 // pred_region
      _
    $region17: #{tpu_custom_call.1} parent=1 // pred_fallthru
      _
    %s18 = smul.u32 0, 32
    %v19 = vlaneseq
    %v20 = vshrl.u32 %v19, 7
    %v21 = vadd.s32 %v20, 8
    %v22 = vadd.s32 %v20, 16
    %v23 = vadd.s32 %v20, 24
    %v24 = vstv %s18
    %v25 = vadd.s32 %v24, %v20
    %v26 = vadd.s32 %v24, %v21
    %v27 = vadd.s32 %v24, %v22
    %v28 = vadd.s32 %v24, %v23
    %vm29 = vcmp.lt.s32.totalorder %v25, 16
    %vm30 = vcmp.lt.s32.totalorder %v26, 16
    %vm31 = vcmp.lt.s32.totalorder %v27, 16
    %vm32 = vcmp.lt.s32.totalorder %v28, 16
    %v33 = vld [vmem:[%s2] sm:$0x3]
    %v34 = vld [vmem:[%s3] sm:$0x3]
    %v35 = vsel %vm29, 1, 0
    %v36 = vsel %vm30, 1, 0
    %v37 = vsel %vm31, 1, 0
    %v38 = vsel %vm32, 1, 0
    %vm39 = vcmp.eq.s32.totalorder %v35, 1
    %vm40 = vcmp.eq.s32.totalorder %v36, 1
    %vm41 = vcmp.eq.s32.totalorder %v37, 1
    %vm42 = vcmp.eq.s32.totalorder %v38, 1
    %v44 = vlaneseq
    %v45 = vshrl.u32 %v44, 7
    %v46 = vsub.s32 0, %v45
    %v47 = vrot.slane %v33, %v46
    %v48 = vlaneseq
    %v49 = vshrl.u32 %v48, 7
    %v50 = vsub.s32 1, %v49
    %v51 = vrot.slane %v33, %v50
    %v55 = vlaneseq
    %v56 = vshrl.u32 %v55, 7
    %v57 = vsub.s32 0, %v56
    %v58 = vrot.slane %v34, %v57
    %v59 = vlaneseq
    %v60 = vshrl.u32 %v59, 7
    %v61 = vsub.s32 1, %v60
    %v62 = vrot.slane %v34, %v61
    %v65 = vsel %vm39, %v47, %v58
    %v66 = vsel %vm39, %v51, %v62
    %v67 = vsel %vm40, %v47, %v58
    %v68 = vsel %vm40, %v51, %v62
    %v69 = vsel %vm41, %v47, %v58
    %v70 = vsel %vm41, %v51, %v62
    %v71 = vsel %vm42, %v47, %v58
    %v72 = vsel %vm42, %v51, %v62
    %v73 = vld [vmem:[%s0] sm:$0xff]
    %v74 = vld [vmem:[%s0 + $0x8] sm:$0xff]
    %v75 = vld [vmem:[%s0 + $0x10] sm:$0xff]
    %v76 = vld [vmem:[%s0 + $0x18] sm:$0xff]
    %78 = vset.pattern.permute.xlu0 0
    %79 = vperm.xlu0 %78, %v73
    %v80 = vpop.permute.xlu0 %79
    %83 = vset.pattern.permute.xlu0 0
    %84 = vperm.xlu0 %83, %v74
    %v85 = vpop.permute.xlu0 %84
    %88 = vset.pattern.permute.xlu0 0
    %89 = vperm.xlu0 %88, %v75
    %v90 = vpop.permute.xlu0 %89
    %93 = vset.pattern.permute.xlu0 0
    %94 = vperm.xlu0 %93, %v76
    %v95 = vpop.permute.xlu0 %94
    %v97 = vmul.f32 %v65, %v80
    %v98 = vmul.f32 %v66, %v80
    %v99 = vmul.f32 %v67, %v85
    %v100 = vmul.f32 %v68, %v85
    %v101 = vmul.f32 %v69, %v90
    %v102 = vmul.f32 %v70, %v90
    %v103 = vmul.f32 %v71, %v95
    %v104 = vmul.f32 %v72, %v95
    %v105 = vld [vmem:[%s1] sm:$0xff]
    %v106 = vld [vmem:[%s1 + $0x8] sm:$0xff]
    %v107 = vld [vmem:[%s1 + $0x10] sm:$0xff]
    %v108 = vld [vmem:[%s1 + $0x18] sm:$0xff]
    %110 = vset.pattern.permute.xlu0 0
    %111 = vperm.xlu0 %110, %v105
    %v112 = vpop.permute.xlu0 %111
    %115 = vset.pattern.permute.xlu0 0
    %116 = vperm.xlu0 %115, %v106
    %v117 = vpop.permute.xlu0 %116
    %120 = vset.pattern.permute.xlu0 0
    %121 = vperm.xlu0 %120, %v107
    %v122 = vpop.permute.xlu0 %121
    %125 = vset.pattern.permute.xlu0 0
    %126 = vperm.xlu0 %125, %v108
    %v127 = vpop.permute.xlu0 %126
    %v129 = vadd.f32 %v97, %v112
    %v130 = vadd.f32 %v98, %v112
    %v131 = vadd.f32 %v99, %v117
    %v132 = vadd.f32 %v100, %v117
    %v133 = vadd.f32 %v101, %v122
    %v134 = vadd.f32 %v102, %v122
    %v135 = vadd.f32 %v103, %v127
    %v136 = vadd.f32 %v104, %v127
    %v137 = vand.u32 2147483647, %v129
    %vm138 = vcmp.le.f32.partialorder %v137, 0.7853982
    %vm139 = vcmp.lt.s32.totalorder %v129, 0
    %v140 = vand.u32 %v129, 2139095040
    %v141 = vshrl.u32 %v140, 23
    %v142 = vsub.s32 %v141, 127
    %v143 = vand.u32 2147483647, %v129
    %v144 = vand.u32 %v143, 8388607
    %v145 = vor.u32 %v144, 8388608
    %v146 = vsub.s32 0, %v145
    %v147 = vadd.s32 %v142, 1
    %vm148 = vcmp.gt.s32.totalorder %v147, 0
    %v149 = vsel %vm148, %v147, 0
    %v150 = vshrl.u32 %v149, 5
    %v151 = vand.u32 %v149, 31
    %v152 = vsub.s32 32, %v151
    %v153 = vshrl.u32 683565275, %v152
    %v154 = vshll.u32 683565275, %v151
    %v155 = vshrl.u32 2475754826, %v152
    %v156 = vor.u32 %v154, %v155
    %v157 = vshll.u32 2475754826, %v151
    %v158 = vshrl.u32 2131351028, %v152
    %v159 = vor.u32 %v157, %v158
    %v160 = vshll.u32 2131351028, %v151
    %v161 = vshrl.u32 2102212464, %v152
    %v162 = vor.u32 %v160, %v161
    %v163 = vshll.u32 2102212464, %v151
    %v164 = vshrl.u32 920167782, %v152
    %v165 = vor.u32 %v163, %v164
    %v166 = vshll.u32 920167782, %v151
    %v167 = vshrl.u32 1326507024, %v152
    %v168 = vor.u32 %v166, %v167
    %vm169 = vcmp.lt.s32.totalorder %v150, 1
    %vm170 = vcmp.lt.s32.totalorder %v150, 2
    %vm171 = vcmp.lt.s32.totalorder %v150, 3
    %vm172 = vcmp.lt.s32.totalorder %v150, 4
    %v173 = vsel %vm169, %v153, %v156
    %v174 = vsel %vm172, %v162, 2102212464
    %v175 = vsel %vm171, %v159, %v174
    %v176 = vsel %vm170, %v173, %v175
    %v177 = vsel %vm169, %v156, %v159
    %v178 = vsel %vm172, %v165, 920167782
    %v179 = vsel %vm171, %v162, %v178
    %v180 = vsel %vm170, %v177, %v179
    %v181 = vsel %vm169, %v159, %v162
    %v182 = vsel %vm172, %v168, 1326507024
    %v183 = vsel %vm171, %v165, %v182
    %v184 = vsel %vm170, %v181, %v183
    %v185 = vshll.u32 %v145, 8
    %v186 = vmul.u32.u64.compose %v185, %v184
    %v187 = vextract.low.u32 %v186
    %v188 = vextract.high.u32 %v186
    %v189 = vmul.u32.u64.compose %v185, %v180
    %v190 = vextract.low.u32 %v189
    %v191 = vextract.high.u32 %v189
    %v192 = vmul.u32 %v185, %v176
    %v193 = vadd.s32 %v188, %v190
    %vm194 = vc.u32 %v188, %v190
    %v195 = vadd.s32 %v191, 1
    %v196 = vsel %vm194, %v195, %v191
    %v197 = vadd.s32 %v192, %v196
    %v198 = vadd.s32 %v197, 536870912
    %v199 = vshrl.u32 %v198, 30
    %v200 = vshll.u32 %v199, 30
    %v201 = vsub.s32 %v197, %v200
    %vm202 = vcmp.lt.s32.totalorder %v201, 0
    %v203 = vsub.s32 0, %v201
    %v204 = vsel %vm202, %v203, %v201
    %v205 = vclz %v204
    %v206 = vsub.s32 %v205, 2
    %vm207 = vcmp.gt.s32.totalorder 0, %v206
    %v208 = vsel %vm207, 0, %v206
    %v209 = vsub.s32 32, %v208
    %v210 = vshll.u32 %v201, %v208
    %v211 = vshrl.u32 %v193, %v209
    %v212 = vor.u32 %v210, %v211
    %v213 = vsub.s32 4294967266, %v208
    %v214 = vadd.s32 %v213, 127
    %v215 = vshll.u32 %v214, 23
    %v216 = vor.u32 4788187, %v215
    %v217 = vand.u32 2147483647, %v216
    %v219 = vcvt.s32.f32 %v212
    %v220 = vmul.f32 %v219, %v217
    %v221 = vxor.u32 %v220, 2147483648
    %v222 = vsel %vm139, %v221, %v220
    %v223 = vsub.s32 4, %v199
    %v224 = vsel %vm139, %v223, %v199
    %v225 = vsel %vm138, %v129, %v222
    %v226 = vsel %vm138, 0, %v224
    %v227 = vcosq.f32.pop %v225
    %v228 = vsinq.f32.pop %v225
    %vm229 = vweird.f32 %v129
    %v230 = vadd.s32 %v226, 3
    %v231 = vand.u32 %v230, 3
    %vm232 = vcmp.lt.s32.totalorder %v231, 2
    %vm233 = vcmp.eq.s32.totalorder %v231, 0
    %v234 = vxor.u32 %v228, 2147483648
    %v235 = vsel %vm233, %v227, %v234
    %vm236 = vcmp.eq.s32.totalorder %v231, 2
    %v237 = vxor.u32 %v227, 2147483648
    %v238 = vsel %vm236, %v237, %v228
    %v239 = vsel %vm232, %v235, %v238
    %v240 = vsel %vm229, nan, %v239
    %v241 = vand.u32 2147483647, %v130
    %vm242 = vcmp.le.f32.partialorder %v241, 0.7853982
    %vm243 = vcmp.lt.s32.totalorder %v130, 0
    %v244 = vand.u32 %v130, 2139095040
    %v245 = vshrl.u32 %v244, 23
    %v246 = vsub.s32 %v245, 127
    %v247 = vand.u32 2147483647, %v130
    %v248 = vand.u32 %v247, 8388607
    %v249 = vor.u32 %v248, 8388608
    %v250 = vsub.s32 0, %v249
    %v251 = vadd.s32 %v246, 1
    %vm252 = vcmp.gt.s32.totalorder %v251, 0
    %v253 = vsel %vm252, %v251, 0
    %v254 = vshrl.u32 %v253, 5
    %v255 = vand.u32 %v253, 31
    %v256 = vsub.s32 32, %v255
    %v257 = vshrl.u32 683565275, %v256
    %v258 = vshll.u32 683565275, %v255
    %v259 = vshrl.u32 2475754826, %v256
    %v260 = vor.u32 %v258, %v259
    %v261 = vshll.u32 2475754826, %v255
    %v262 = vshrl.u32 2131351028, %v256
    %v263 = vor.u32 %v261, %v262
    %v264 = vshll.u32 2131351028, %v255
    %v265 = vshrl.u32 2102212464, %v256
    %v266 = vor.u32 %v264, %v265
    %v267 = vshll.u32 2102212464, %v255
    %v268 = vshrl.u32 920167782, %v256
    %v269 = vor.u32 %v267, %v268
    %v270 = vshll.u32 920167782, %v255
    %v271 = vshrl.u32 1326507024, %v256
    %v272 = vor.u32 %v270, %v271
    %vm273 = vcmp.lt.s32.totalorder %v254, 1
    %vm274 = vcmp.lt.s32.totalorder %v254, 2
    %vm275 = vcmp.lt.s32.totalorder %v254, 3
    %vm276 = vcmp.lt.s32.totalorder %v254, 4
    %v277 = vsel %vm273, %v257, %v260
    %v278 = vsel %vm276, %v266, 2102212464
    %v279 = vsel %vm275, %v263, %v278
    %v280 = vsel %vm274, %v277, %v279
    %v281 = vsel %vm273, %v260, %v263
    %v282 = vsel %vm276, %v269, 920167782
    %v283 = vsel %vm275, %v266, %v282
    %v284 = vsel %vm274, %v281, %v283
    %v285 = vsel %vm273, %v263, %v266
    %v286 = vsel %vm276, %v272, 1326507024
    %v287 = vsel %vm275, %v269, %v286
    %v288 = vsel %vm274, %v285, %v287
    %v289 = vshll.u32 %v249, 8
    %v290 = vmul.u32.u64.compose %v289, %v288
    %v291 = vextract.low.u32 %v290
    %v292 = vextract.high.u32 %v290
    %v293 = vmul.u32.u64.compose %v289, %v284
    %v294 = vextract.low.u32 %v293
    %v295 = vextract.high.u32 %v293
    %v296 = vmul.u32 %v289, %v280
    %v297 = vadd.s32 %v292, %v294
    %vm298 = vc.u32 %v292, %v294
    %v299 = vadd.s32 %v295, 1
    %v300 = vsel %vm298, %v299, %v295
    %v301 = vadd.s32 %v296, %v300
    %v302 = vadd.s32 %v301, 536870912
    %v303 = vshrl.u32 %v302, 30
    %v304 = vshll.u32 %v303, 30
    %v305 = vsub.s32 %v301, %v304
    %vm306 = vcmp.lt.s32.totalorder %v305, 0
    %v307 = vsub.s32 0, %v305
    %v308 = vsel %vm306, %v307, %v305
    %v309 = vclz %v308
    %v310 = vsub.s32 %v309, 2
    %vm311 = vcmp.gt.s32.totalorder 0, %v310
    %v312 = vsel %vm311, 0, %v310
    %v313 = vsub.s32 32, %v312
    %v314 = vshll.u32 %v305, %v312
    %v315 = vshrl.u32 %v297, %v313
    %v316 = vor.u32 %v314, %v315
    %v317 = vsub.s32 4294967266, %v312
    %v318 = vadd.s32 %v317, 127
    %v319 = vshll.u32 %v318, 23
    %v320 = vor.u32 4788187, %v319
    %v321 = vand.u32 2147483647, %v320
    %v323 = vcvt.s32.f32 %v316
    %v324 = vmul.f32 %v323, %v321
    %v325 = vxor.u32 %v324, 2147483648
    %v326 = vsel %vm243, %v325, %v324
    %v327 = vsub.s32 4, %v303
    %v328 = vsel %vm243, %v327, %v303
    %v329 = vsel %vm242, %v130, %v326
    %v330 = vsel %vm242, 0, %v328
    %v331 = vcosq.f32.pop %v329
    %v332 = vsinq.f32.pop %v329
    %vm333 = vweird.f32 %v130
    %v334 = vadd.s32 %v330, 3
    %v335 = vand.u32 %v334, 3
    %vm336 = vcmp.lt.s32.totalorder %v335, 2
    %vm337 = vcmp.eq.s32.totalorder %v335, 0
    %v338 = vxor.u32 %v332, 2147483648
    %v339 = vsel %vm337, %v331, %v338
    %vm340 = vcmp.eq.s32.totalorder %v335, 2
    %v341 = vxor.u32 %v331, 2147483648
    %v342 = vsel %vm340, %v341, %v332
    %v343 = vsel %vm336, %v339, %v342
    %v344 = vsel %vm333, nan, %v343
    %v345 = vand.u32 2147483647, %v131
    %vm346 = vcmp.le.f32.partialorder %v345, 0.7853982
    %vm347 = vcmp.lt.s32.totalorder %v131, 0
    %v348 = vand.u32 %v131, 2139095040
    %v349 = vshrl.u32 %v348, 23
    %v350 = vsub.s32 %v349, 127
    %v351 = vand.u32 2147483647, %v131
    %v352 = vand.u32 %v351, 8388607
    %v353 = vor.u32 %v352, 8388608
    %v354 = vsub.s32 0, %v353
    %v355 = vadd.s32 %v350, 1
    %vm356 = vcmp.gt.s32.totalorder %v355, 0
    %v357 = vsel %vm356, %v355, 0
    %v358 = vshrl.u32 %v357, 5
    %v359 = vand.u32 %v357, 31
    %v360 = vsub.s32 32, %v359
    %v361 = vshrl.u32 683565275, %v360
    %v362 = vshll.u32 683565275, %v359
    %v363 = vshrl.u32 2475754826, %v360
    %v364 = vor.u32 %v362, %v363
    %v365 = vshll.u32 2475754826, %v359
    %v366 = vshrl.u32 2131351028, %v360
    %v367 = vor.u32 %v365, %v366
    %v368 = vshll.u32 2131351028, %v359
    %v369 = vshrl.u32 2102212464, %v360
    %v370 = vor.u32 %v368, %v369
    %v371 = vshll.u32 2102212464, %v359
    %v372 = vshrl.u32 920167782, %v360
    %v373 = vor.u32 %v371, %v372
    %v374 = vshll.u32 920167782, %v359
    %v375 = vshrl.u32 1326507024, %v360
    %v376 = vor.u32 %v374, %v375
    %vm377 = vcmp.lt.s32.totalorder %v358, 1
    %vm378 = vcmp.lt.s32.totalorder %v358, 2
    %vm379 = vcmp.lt.s32.totalorder %v358, 3
    %vm380 = vcmp.lt.s32.totalorder %v358, 4
    %v381 = vsel %vm377, %v361, %v364
    %v382 = vsel %vm380, %v370, 2102212464
    %v383 = vsel %vm379, %v367, %v382
    %v384 = vsel %vm378, %v381, %v383
    %v385 = vsel %vm377, %v364, %v367
    %v386 = vsel %vm380, %v373, 920167782
    %v387 = vsel %vm379, %v370, %v386
    %v388 = vsel %vm378, %v385, %v387
    %v389 = vsel %vm377, %v367, %v370
    %v390 = vsel %vm380, %v376, 1326507024
    %v391 = vsel %vm379, %v373, %v390
    %v392 = vsel %vm378, %v389, %v391
    %v393 = vshll.u32 %v353, 8
    %v394 = vmul.u32.u64.compose %v393, %v392
    %v395 = vextract.low.u32 %v394
    %v396 = vextract.high.u32 %v394
    %v397 = vmul.u32.u64.compose %v393, %v388
    %v398 = vextract.low.u32 %v397
    %v399 = vextract.high.u32 %v397
    %v400 = vmul.u32 %v393, %v384
    %v401 = vadd.s32 %v396, %v398
    %vm402 = vc.u32 %v396, %v398
    %v403 = vadd.s32 %v399, 1
    %v404 = vsel %vm402, %v403, %v399
    %v405 = vadd.s32 %v400, %v404
    %v406 = vadd.s32 %v405, 536870912
    %v407 = vshrl.u32 %v406, 30
    %v408 = vshll.u32 %v407, 30
    %v409 = vsub.s32 %v405, %v408
    %vm410 = vcmp.lt.s32.totalorder %v409, 0
    %v411 = vsub.s32 0, %v409
    %v412 = vsel %vm410, %v411, %v409
    %v413 = vclz %v412
    %v414 = vsub.s32 %v413, 2
    %vm415 = vcmp.gt.s32.totalorder 0, %v414
    %v416 = vsel %vm415, 0, %v414
    %v417 = vsub.s32 32, %v416
    %v418 = vshll.u32 %v409, %v416
    %v419 = vshrl.u32 %v401, %v417
    %v420 = vor.u32 %v418, %v419
    %v421 = vsub.s32 4294967266, %v416
    %v422 = vadd.s32 %v421, 127
    %v423 = vshll.u32 %v422, 23
    %v424 = vor.u32 4788187, %v423
    %v425 = vand.u32 2147483647, %v424
    %v427 = vcvt.s32.f32 %v420
    %v428 = vmul.f32 %v427, %v425
    %v429 = vxor.u32 %v428, 2147483648
    %v430 = vsel %vm347, %v429, %v428
    %v431 = vsub.s32 4, %v407
    %v432 = vsel %vm347, %v431, %v407
    %v433 = vsel %vm346, %v131, %v430
    %v434 = vsel %vm346, 0, %v432
    %v435 = vcosq.f32.pop %v433
    %v436 = vsinq.f32.pop %v433
    %vm437 = vweird.f32 %v131
    %v438 = vadd.s32 %v434, 3
    %v439 = vand.u32 %v438, 3
    %vm440 = vcmp.lt.s32.totalorder %v439, 2
    %vm441 = vcmp.eq.s32.totalorder %v439, 0
    %v442 = vxor.u32 %v436, 2147483648
    %v443 = vsel %vm441, %v435, %v442
    %vm444 = vcmp.eq.s32.totalorder %v439, 2
    %v445 = vxor.u32 %v435, 2147483648
    %v446 = vsel %vm444, %v445, %v436
    %v447 = vsel %vm440, %v443, %v446
    %v448 = vsel %vm437, nan, %v447
    %v449 = vand.u32 2147483647, %v132
    %vm450 = vcmp.le.f32.partialorder %v449, 0.7853982
    %vm451 = vcmp.lt.s32.totalorder %v132, 0
    %v452 = vand.u32 %v132, 2139095040
    %v453 = vshrl.u32 %v452, 23
    %v454 = vsub.s32 %v453, 127
    %v455 = vand.u32 2147483647, %v132
    %v456 = vand.u32 %v455, 8388607
    %v457 = vor.u32 %v456, 8388608
    %v458 = vsub.s32 0, %v457
    %v459 = vadd.s32 %v454, 1
    %vm460 = vcmp.gt.s32.totalorder %v459, 0
    %v461 = vsel %vm460, %v459, 0
    %v462 = vshrl.u32 %v461, 5
    %v463 = vand.u32 %v461, 31
    %v464 = vsub.s32 32, %v463
    %v465 = vshrl.u32 683565275, %v464
    %v466 = vshll.u32 683565275, %v463
    %v467 = vshrl.u32 2475754826, %v464
    %v468 = vor.u32 %v466, %v467
    %v469 = vshll.u32 2475754826, %v463
    %v470 = vshrl.u32 2131351028, %v464
    %v471 = vor.u32 %v469, %v470
    %v472 = vshll.u32 2131351028, %v463
    %v473 = vshrl.u32 2102212464, %v464
    %v474 = vor.u32 %v472, %v473
    %v475 = vshll.u32 2102212464, %v463
    %v476 = vshrl.u32 920167782, %v464
    %v477 = vor.u32 %v475, %v476
    %v478 = vshll.u32 920167782, %v463
    %v479 = vshrl.u32 1326507024, %v464
    %v480 = vor.u32 %v478, %v479
    %vm481 = vcmp.lt.s32.totalorder %v462, 1
    %vm482 = vcmp.lt.s32.totalorder %v462, 2
    %vm483 = vcmp.lt.s32.totalorder %v462, 3
    %vm484 = vcmp.lt.s32.totalorder %v462, 4
    %v485 = vsel %vm481, %v465, %v468
    %v486 = vsel %vm484, %v474, 2102212464
    %v487 = vsel %vm483, %v471, %v486
    %v488 = vsel %vm482, %v485, %v487
    %v489 = vsel %vm481, %v468, %v471
    %v490 = vsel %vm484, %v477, 920167782
    %v491 = vsel %vm483, %v474, %v490
    %v492 = vsel %vm482, %v489, %v491
    %v493 = vsel %vm481, %v471, %v474
    %v494 = vsel %vm484, %v480, 1326507024
    %v495 = vsel %vm483, %v477, %v494
    %v496 = vsel %vm482, %v493, %v495
    %v497 = vshll.u32 %v457, 8
    %v498 = vmul.u32.u64.compose %v497, %v496
    %v499 = vextract.low.u32 %v498
    %v500 = vextract.high.u32 %v498
    %v501 = vmul.u32.u64.compose %v497, %v492
    %v502 = vextract.low.u32 %v501
    %v503 = vextract.high.u32 %v501
    %v504 = vmul.u32 %v497, %v488
    %v505 = vadd.s32 %v500, %v502
    %vm506 = vc.u32 %v500, %v502
    %v507 = vadd.s32 %v503, 1
    %v508 = vsel %vm506, %v507, %v503
    %v509 = vadd.s32 %v504, %v508
    %v510 = vadd.s32 %v509, 536870912
    %v511 = vshrl.u32 %v510, 30
    %v512 = vshll.u32 %v511, 30
    %v513 = vsub.s32 %v509, %v512
    %vm514 = vcmp.lt.s32.totalorder %v513, 0
    %v515 = vsub.s32 0, %v513
    %v516 = vsel %vm514, %v515, %v513
    %v517 = vclz %v516
    %v518 = vsub.s32 %v517, 2
    %vm519 = vcmp.gt.s32.totalorder 0, %v518
    %v520 = vsel %vm519, 0, %v518
    %v521 = vsub.s32 32, %v520
    %v522 = vshll.u32 %v513, %v520
    %v523 = vshrl.u32 %v505, %v521
    %v524 = vor.u32 %v522, %v523
    %v525 = vsub.s32 4294967266, %v520
    %v526 = vadd.s32 %v525, 127
    %v527 = vshll.u32 %v526, 23
    %v528 = vor.u32 4788187, %v527
    %v529 = vand.u32 2147483647, %v528
    %v531 = vcvt.s32.f32 %v524
    %v532 = vmul.f32 %v531, %v529
    %v533 = vxor.u32 %v532, 2147483648
    %v534 = vsel %vm451, %v533, %v532
    %v535 = vsub.s32 4, %v511
    %v536 = vsel %vm451, %v535, %v511
    %v537 = vsel %vm450, %v132, %v534
    %v538 = vsel %vm450, 0, %v536
    %v539 = vcosq.f32.pop %v537
    %v540 = vsinq.f32.pop %v537
    %vm541 = vweird.f32 %v132
    %v542 = vadd.s32 %v538, 3
    %v543 = vand.u32 %v542, 3
    %vm544 = vcmp.lt.s32.totalorder %v543, 2
    %vm545 = vcmp.eq.s32.totalorder %v543, 0
    %v546 = vxor.u32 %v540, 2147483648
    %v547 = vsel %vm545, %v539, %v546
    %vm548 = vcmp.eq.s32.totalorder %v543, 2
    %v549 = vxor.u32 %v539, 2147483648
    %v550 = vsel %vm548, %v549, %v540
    %v551 = vsel %vm544, %v547, %v550
    %v552 = vsel %vm541, nan, %v551
    %v553 = vand.u32 2147483647, %v133
    %vm554 = vcmp.le.f32.partialorder %v553, 0.7853982
    %vm555 = vcmp.lt.s32.totalorder %v133, 0
    %v556 = vand.u32 %v133, 2139095040
    %v557 = vshrl.u32 %v556, 23
    %v558 = vsub.s32 %v557, 127
    %v559 = vand.u32 2147483647, %v133
    %v560 = vand.u32 %v559, 8388607
    %v561 = vor.u32 %v560, 8388608
    %v562 = vsub.s32 0, %v561
    %v563 = vadd.s32 %v558, 1
    %vm564 = vcmp.gt.s32.totalorder %v563, 0
    %v565 = vsel %vm564, %v563, 0
    %v566 = vshrl.u32 %v565, 5
    %v567 = vand.u32 %v565, 31
    %v568 = vsub.s32 32, %v567
    %v569 = vshrl.u32 683565275, %v568
    %v570 = vshll.u32 683565275, %v567
    %v571 = vshrl.u32 2475754826, %v568
    %v572 = vor.u32 %v570, %v571
    %v573 = vshll.u32 2475754826, %v567
    %v574 = vshrl.u32 2131351028, %v568
    %v575 = vor.u32 %v573, %v574
    %v576 = vshll.u32 2131351028, %v567
    %v577 = vshrl.u32 2102212464, %v568
    %v578 = vor.u32 %v576, %v577
    %v579 = vshll.u32 2102212464, %v567
    %v580 = vshrl.u32 920167782, %v568
    %v581 = vor.u32 %v579, %v580
    %v582 = vshll.u32 920167782, %v567
    %v583 = vshrl.u32 1326507024, %v568
    %v584 = vor.u32 %v582, %v583
    %vm585 = vcmp.lt.s32.totalorder %v566, 1
    %vm586 = vcmp.lt.s32.totalorder %v566, 2
    %vm587 = vcmp.lt.s32.totalorder %v566, 3
    %vm588 = vcmp.lt.s32.totalorder %v566, 4
    %v589 = vsel %vm585, %v569, %v572
    %v590 = vsel %vm588, %v578, 2102212464
    %v591 = vsel %vm587, %v575, %v590
    %v592 = vsel %vm586, %v589, %v591
    %v593 = vsel %vm585, %v572, %v575
    %v594 = vsel %vm588, %v581, 920167782
    %v595 = vsel %vm587, %v578, %v594
    %v596 = vsel %vm586, %v593, %v595
    %v597 = vsel %vm585, %v575, %v578
    %v598 = vsel %vm588, %v584, 1326507024
    %v599 = vsel %vm587, %v581, %v598
    %v600 = vsel %vm586, %v597, %v599
    %v601 = vshll.u32 %v561, 8
    %v602 = vmul.u32.u64.compose %v601, %v600
    %v603 = vextract.low.u32 %v602
    %v604 = vextract.high.u32 %v602
    %v605 = vmul.u32.u64.compose %v601, %v596
    %v606 = vextract.low.u32 %v605
    %v607 = vextract.high.u32 %v605
    %v608 = vmul.u32 %v601, %v592
    %v609 = vadd.s32 %v604, %v606
    %vm610 = vc.u32 %v604, %v606
    %v611 = vadd.s32 %v607, 1
    %v612 = vsel %vm610, %v611, %v607
    %v613 = vadd.s32 %v608, %v612
    %v614 = vadd.s32 %v613, 536870912
    %v615 = vshrl.u32 %v614, 30
    %v616 = vshll.u32 %v615, 30
    %v617 = vsub.s32 %v613, %v616
    %vm618 = vcmp.lt.s32.totalorder %v617, 0
    %v619 = vsub.s32 0, %v617
    %v620 = vsel %vm618, %v619, %v617
    %v621 = vclz %v620
    %v622 = vsub.s32 %v621, 2
    %vm623 = vcmp.gt.s32.totalorder 0, %v622
    %v624 = vsel %vm623, 0, %v622
    %v625 = vsub.s32 32, %v624
    %v626 = vshll.u32 %v617, %v624
    %v627 = vshrl.u32 %v609, %v625
    %v628 = vor.u32 %v626, %v627
    %v629 = vsub.s32 4294967266, %v624
    %v630 = vadd.s32 %v629, 127
    %v631 = vshll.u32 %v630, 23
    %v632 = vor.u32 4788187, %v631
    %v633 = vand.u32 2147483647, %v632
    %v635 = vcvt.s32.f32 %v628
    %v636 = vmul.f32 %v635, %v633
    %v637 = vxor.u32 %v636, 2147483648
    %v638 = vsel %vm555, %v637, %v636
    %v639 = vsub.s32 4, %v615
    %v640 = vsel %vm555, %v639, %v615
    %v641 = vsel %vm554, %v133, %v638
    %v642 = vsel %vm554, 0, %v640
    %v643 = vcosq.f32.pop %v641
    %v644 = vsinq.f32.pop %v641
    %vm645 = vweird.f32 %v133
    %v646 = vadd.s32 %v642, 3
    %v647 = vand.u32 %v646, 3
    %vm648 = vcmp.lt.s32.totalorder %v647, 2
    %vm649 = vcmp.eq.s32.totalorder %v647, 0
    %v650 = vxor.u32 %v644, 2147483648
    %v651 = vsel %vm649, %v643, %v650
    %vm652 = vcmp.eq.s32.totalorder %v647, 2
    %v653 = vxor.u32 %v643, 2147483648
    %v654 = vsel %vm652, %v653, %v644
    %v655 = vsel %vm648, %v651, %v654
    %v656 = vsel %vm645, nan, %v655
    %v657 = vand.u32 2147483647, %v134
    %vm658 = vcmp.le.f32.partialorder %v657, 0.7853982
    %vm659 = vcmp.lt.s32.totalorder %v134, 0
    %v660 = vand.u32 %v134, 2139095040
    %v661 = vshrl.u32 %v660, 23
    %v662 = vsub.s32 %v661, 127
    %v663 = vand.u32 2147483647, %v134
    %v664 = vand.u32 %v663, 8388607
    %v665 = vor.u32 %v664, 8388608
    %v666 = vsub.s32 0, %v665
    %v667 = vadd.s32 %v662, 1
    %vm668 = vcmp.gt.s32.totalorder %v667, 0
    %v669 = vsel %vm668, %v667, 0
    %v670 = vshrl.u32 %v669, 5
    %v671 = vand.u32 %v669, 31
    %v672 = vsub.s32 32, %v671
    %v673 = vshrl.u32 683565275, %v672
    %v674 = vshll.u32 683565275, %v671
    %v675 = vshrl.u32 2475754826, %v672
    %v676 = vor.u32 %v674, %v675
    %v677 = vshll.u32 2475754826, %v671
    %v678 = vshrl.u32 2131351028, %v672
    %v679 = vor.u32 %v677, %v678
    %v680 = vshll.u32 2131351028, %v671
    %v681 = vshrl.u32 2102212464, %v672
    %v682 = vor.u32 %v680, %v681
    %v683 = vshll.u32 2102212464, %v671
    %v684 = vshrl.u32 920167782, %v672
    %v685 = vor.u32 %v683, %v684
    %v686 = vshll.u32 920167782, %v671
    %v687 = vshrl.u32 1326507024, %v672
    %v688 = vor.u32 %v686, %v687
    %vm689 = vcmp.lt.s32.totalorder %v670, 1
    %vm690 = vcmp.lt.s32.totalorder %v670, 2
    %vm691 = vcmp.lt.s32.totalorder %v670, 3
    %vm692 = vcmp.lt.s32.totalorder %v670, 4
    %v693 = vsel %vm689, %v673, %v676
    %v694 = vsel %vm692, %v682, 2102212464
    %v695 = vsel %vm691, %v679, %v694
    %v696 = vsel %vm690, %v693, %v695
    %v697 = vsel %vm689, %v676, %v679
    %v698 = vsel %vm692, %v685, 920167782
    %v699 = vsel %vm691, %v682, %v698
    %v700 = vsel %vm690, %v697, %v699
    %v701 = vsel %vm689, %v679, %v682
    %v702 = vsel %vm692, %v688, 1326507024
    %v703 = vsel %vm691, %v685, %v702
    %v704 = vsel %vm690, %v701, %v703
    %v705 = vshll.u32 %v665, 8
    %v706 = vmul.u32.u64.compose %v705, %v704
    %v707 = vextract.low.u32 %v706
    %v708 = vextract.high.u32 %v706
    %v709 = vmul.u32.u64.compose %v705, %v700
    %v710 = vextract.low.u32 %v709
    %v711 = vextract.high.u32 %v709
    %v712 = vmul.u32 %v705, %v696
    %v713 = vadd.s32 %v708, %v710
    %vm714 = vc.u32 %v708, %v710
    %v715 = vadd.s32 %v711, 1
    %v716 = vsel %vm714, %v715, %v711
    %v717 = vadd.s32 %v712, %v716
    %v718 = vadd.s32 %v717, 536870912
    %v719 = vshrl.u32 %v718, 30
    %v720 = vshll.u32 %v719, 30
    %v721 = vsub.s32 %v717, %v720
    %vm722 = vcmp.lt.s32.totalorder %v721, 0
    %v723 = vsub.s32 0, %v721
    %v724 = vsel %vm722, %v723, %v721
    %v725 = vclz %v724
    %v726 = vsub.s32 %v725, 2
    %vm727 = vcmp.gt.s32.totalorder 0, %v726
    %v728 = vsel %vm727, 0, %v726
    %v729 = vsub.s32 32, %v728
    %v730 = vshll.u32 %v721, %v728
    %v731 = vshrl.u32 %v713, %v729
    %v732 = vor.u32 %v730, %v731
    %v733 = vsub.s32 4294967266, %v728
    %v734 = vadd.s32 %v733, 127
    %v735 = vshll.u32 %v734, 23
    %v736 = vor.u32 4788187, %v735
    %v737 = vand.u32 2147483647, %v736
    %v739 = vcvt.s32.f32 %v732
    %v740 = vmul.f32 %v739, %v737
    %v741 = vxor.u32 %v740, 2147483648
    %v742 = vsel %vm659, %v741, %v740
    %v743 = vsub.s32 4, %v719
    %v744 = vsel %vm659, %v743, %v719
    %v745 = vsel %vm658, %v134, %v742
    %v746 = vsel %vm658, 0, %v744
    %v747 = vcosq.f32.pop %v745
    %v748 = vsinq.f32.pop %v745
    %vm749 = vweird.f32 %v134
    %v750 = vadd.s32 %v746, 3
    %v751 = vand.u32 %v750, 3
    %vm752 = vcmp.lt.s32.totalorder %v751, 2
    %vm753 = vcmp.eq.s32.totalorder %v751, 0
    %v754 = vxor.u32 %v748, 2147483648
    %v755 = vsel %vm753, %v747, %v754
    %vm756 = vcmp.eq.s32.totalorder %v751, 2
    %v757 = vxor.u32 %v747, 2147483648
    %v758 = vsel %vm756, %v757, %v748
    %v759 = vsel %vm752, %v755, %v758
    %v760 = vsel %vm749, nan, %v759
    %v761 = vand.u32 2147483647, %v135
    %vm762 = vcmp.le.f32.partialorder %v761, 0.7853982
    %vm763 = vcmp.lt.s32.totalorder %v135, 0
    %v764 = vand.u32 %v135, 2139095040
    %v765 = vshrl.u32 %v764, 23
    %v766 = vsub.s32 %v765, 127
    %v767 = vand.u32 2147483647, %v135
    %v768 = vand.u32 %v767, 8388607
    %v769 = vor.u32 %v768, 8388608
    %v770 = vsub.s32 0, %v769
    %v771 = vadd.s32 %v766, 1
    %vm772 = vcmp.gt.s32.totalorder %v771, 0
    %v773 = vsel %vm772, %v771, 0
    %v774 = vshrl.u32 %v773, 5
    %v775 = vand.u32 %v773, 31
    %v776 = vsub.s32 32, %v775
    %v777 = vshrl.u32 683565275, %v776
    %v778 = vshll.u32 683565275, %v775
    %v779 = vshrl.u32 2475754826, %v776
    %v780 = vor.u32 %v778, %v779
    %v781 = vshll.u32 2475754826, %v775
    %v782 = vshrl.u32 2131351028, %v776
    %v783 = vor.u32 %v781, %v782
    %v784 = vshll.u32 2131351028, %v775
    %v785 = vshrl.u32 2102212464, %v776
    %v786 = vor.u32 %v784, %v785
    %v787 = vshll.u32 2102212464, %v775
    %v788 = vshrl.u32 920167782, %v776
    %v789 = vor.u32 %v787, %v788
    %v790 = vshll.u32 920167782, %v775
    %v791 = vshrl.u32 1326507024, %v776
    %v792 = vor.u32 %v790, %v791
    %vm793 = vcmp.lt.s32.totalorder %v774, 1
    %vm794 = vcmp.lt.s32.totalorder %v774, 2
    %vm795 = vcmp.lt.s32.totalorder %v774, 3
    %vm796 = vcmp.lt.s32.totalorder %v774, 4
    %v797 = vsel %vm793, %v777, %v780
    %v798 = vsel %vm796, %v786, 2102212464
    %v799 = vsel %vm795, %v783, %v798
    %v800 = vsel %vm794, %v797, %v799
    %v801 = vsel %vm793, %v780, %v783
    %v802 = vsel %vm796, %v789, 920167782
    %v803 = vsel %vm795, %v786, %v802
    %v804 = vsel %vm794, %v801, %v803
    %v805 = vsel %vm793, %v783, %v786
    %v806 = vsel %vm796, %v792, 1326507024
    %v807 = vsel %vm795, %v789, %v806
    %v808 = vsel %vm794, %v805, %v807
    %v809 = vshll.u32 %v769, 8
    %v810 = vmul.u32.u64.compose %v809, %v808
    %v811 = vextract.low.u32 %v810
    %v812 = vextract.high.u32 %v810
    %v813 = vmul.u32.u64.compose %v809, %v804
    %v814 = vextract.low.u32 %v813
    %v815 = vextract.high.u32 %v813
    %v816 = vmul.u32 %v809, %v800
    %v817 = vadd.s32 %v812, %v814
    %vm818 = vc.u32 %v812, %v814
    %v819 = vadd.s32 %v815, 1
    %v820 = vsel %vm818, %v819, %v815
    %v821 = vadd.s32 %v816, %v820
    %v822 = vadd.s32 %v821, 536870912
    %v823 = vshrl.u32 %v822, 30
    %v824 = vshll.u32 %v823, 30
    %v825 = vsub.s32 %v821, %v824
    %vm826 = vcmp.lt.s32.totalorder %v825, 0
    %v827 = vsub.s32 0, %v825
    %v828 = vsel %vm826, %v827, %v825
    %v829 = vclz %v828
    %v830 = vsub.s32 %v829, 2
    %vm831 = vcmp.gt.s32.totalorder 0, %v830
    %v832 = vsel %vm831, 0, %v830
    %v833 = vsub.s32 32, %v832
    %v834 = vshll.u32 %v825, %v832
    %v835 = vshrl.u32 %v817, %v833
    %v836 = vor.u32 %v834, %v835
    %v837 = vsub.s32 4294967266, %v832
    %v838 = vadd.s32 %v837, 127
    %v839 = vshll.u32 %v838, 23
    %v840 = vor.u32 4788187, %v839
    %v841 = vand.u32 2147483647, %v840
    %v843 = vcvt.s32.f32 %v836
    %v844 = vmul.f32 %v843, %v841
    %v845 = vxor.u32 %v844, 2147483648
    %v846 = vsel %vm763, %v845, %v844
    %v847 = vsub.s32 4, %v823
    %v848 = vsel %vm763, %v847, %v823
    %v849 = vsel %vm762, %v135, %v846
    %v850 = vsel %vm762, 0, %v848
    %v851 = vcosq.f32.pop %v849
    %v852 = vsinq.f32.pop %v849
    %vm853 = vweird.f32 %v135
    %v854 = vadd.s32 %v850, 3
    %v855 = vand.u32 %v854, 3
    %vm856 = vcmp.lt.s32.totalorder %v855, 2
    %vm857 = vcmp.eq.s32.totalorder %v855, 0
    %v858 = vxor.u32 %v852, 2147483648
    %v859 = vsel %vm857, %v851, %v858
    %vm860 = vcmp.eq.s32.totalorder %v855, 2
    %v861 = vxor.u32 %v851, 2147483648
    %v862 = vsel %vm860, %v861, %v852
    %v863 = vsel %vm856, %v859, %v862
    %v864 = vsel %vm853, nan, %v863
    %v865 = vand.u32 2147483647, %v136
    %vm866 = vcmp.le.f32.partialorder %v865, 0.7853982
    %vm867 = vcmp.lt.s32.totalorder %v136, 0
    %v868 = vand.u32 %v136, 2139095040
    %v869 = vshrl.u32 %v868, 23
    %v870 = vsub.s32 %v869, 127
    %v871 = vand.u32 2147483647, %v136
    %v872 = vand.u32 %v871, 8388607
    %v873 = vor.u32 %v872, 8388608
    %v874 = vsub.s32 0, %v873
    %v875 = vadd.s32 %v870, 1
    %vm876 = vcmp.gt.s32.totalorder %v875, 0
    %v877 = vsel %vm876, %v875, 0
    %v878 = vshrl.u32 %v877, 5
    %v879 = vand.u32 %v877, 31
    %v880 = vsub.s32 32, %v879
    %v881 = vshrl.u32 683565275, %v880
    %v882 = vshll.u32 683565275, %v879
    %v883 = vshrl.u32 2475754826, %v880
    %v884 = vor.u32 %v882, %v883
    %v885 = vshll.u32 2475754826, %v879
    %v886 = vshrl.u32 2131351028, %v880
    %v887 = vor.u32 %v885, %v886
    %v888 = vshll.u32 2131351028, %v879
    %v889 = vshrl.u32 2102212464, %v880
    %v890 = vor.u32 %v888, %v889
    %v891 = vshll.u32 2102212464, %v879
    %v892 = vshrl.u32 920167782, %v880
    %v893 = vor.u32 %v891, %v892
    %v894 = vshll.u32 920167782, %v879
    %v895 = vshrl.u32 1326507024, %v880
    %v896 = vor.u32 %v894, %v895
    %vm897 = vcmp.lt.s32.totalorder %v878, 1
    %vm898 = vcmp.lt.s32.totalorder %v878, 2
    %vm899 = vcmp.lt.s32.totalorder %v878, 3
    %vm900 = vcmp.lt.s32.totalorder %v878, 4
    %v901 = vsel %vm897, %v881, %v884
    %v902 = vsel %vm900, %v890, 2102212464
    %v903 = vsel %vm899, %v887, %v902
    %v904 = vsel %vm898, %v901, %v903
    %v905 = vsel %vm897, %v884, %v887
    %v906 = vsel %vm900, %v893, 920167782
    %v907 = vsel %vm899, %v890, %v906
    %v908 = vsel %vm898, %v905, %v907
    %v909 = vsel %vm897, %v887, %v890
    %v910 = vsel %vm900, %v896, 1326507024
    %v911 = vsel %vm899, %v893, %v910
    %v912 = vsel %vm898, %v909, %v911
    %v913 = vshll.u32 %v873, 8
    %v914 = vmul.u32.u64.compose %v913, %v912
    %v915 = vextract.low.u32 %v914
    %v916 = vextract.high.u32 %v914
    %v917 = vmul.u32.u64.compose %v913, %v908
    %v918 = vextract.low.u32 %v917
    %v919 = vextract.high.u32 %v917
    %v920 = vmul.u32 %v913, %v904
    %v921 = vadd.s32 %v916, %v918
    %vm922 = vc.u32 %v916, %v918
    %v923 = vadd.s32 %v919, 1
    %v924 = vsel %vm922, %v923, %v919
    %v925 = vadd.s32 %v920, %v924
    %v926 = vadd.s32 %v925, 536870912
    %v927 = vshrl.u32 %v926, 30
    %v928 = vshll.u32 %v927, 30
    %v929 = vsub.s32 %v925, %v928
    %vm930 = vcmp.lt.s32.totalorder %v929, 0
    %v931 = vsub.s32 0, %v929
    %v932 = vsel %vm930, %v931, %v929
    %v933 = vclz %v932
    %v934 = vsub.s32 %v933, 2
    %vm935 = vcmp.gt.s32.totalorder 0, %v934
    %v936 = vsel %vm935, 0, %v934
    %v937 = vsub.s32 32, %v936
    %v938 = vshll.u32 %v929, %v936
    %v939 = vshrl.u32 %v921, %v937
    %v940 = vor.u32 %v938, %v939
    %v941 = vsub.s32 4294967266, %v936
    %v942 = vadd.s32 %v941, 127
    %v943 = vshll.u32 %v942, 23
    %v944 = vor.u32 4788187, %v943
    %v945 = vand.u32 2147483647, %v944
    %v947 = vcvt.s32.f32 %v940
    %v948 = vmul.f32 %v947, %v945
    %v949 = vxor.u32 %v948, 2147483648
    %v950 = vsel %vm867, %v949, %v948
    %v951 = vsub.s32 4, %v927
    %v952 = vsel %vm867, %v951, %v927
    %v953 = vsel %vm866, %v136, %v950
    %v954 = vsel %vm866, 0, %v952
    %v955 = vcosq.f32.pop %v953
    %v956 = vsinq.f32.pop %v953
    %vm957 = vweird.f32 %v136
    %v958 = vadd.s32 %v954, 3
    %v959 = vand.u32 %v958, 3
    %vm960 = vcmp.lt.s32.totalorder %v959, 2
    %vm961 = vcmp.eq.s32.totalorder %v959, 0
    %v962 = vxor.u32 %v956, 2147483648
    %v963 = vsel %vm961, %v955, %v962
    %vm964 = vcmp.eq.s32.totalorder %v959, 2
    %v965 = vxor.u32 %v955, 2147483648
    %v966 = vsel %vm964, %v965, %v956
    %v967 = vsel %vm960, %v963, %v966
    %v968 = vsel %vm957, nan, %v967
    %969 = vst [vmem:[#allocation2] sm:$0xff] %v240
    %970 = vst [vmem:[#allocation2 + $0x8] sm:$0xff] %v344
    %971 = vst [vmem:[#allocation2 + $0x10] sm:$0xff] %v448
    %972 = vst [vmem:[#allocation2 + $0x18] sm:$0xff] %v552
    %973 = vst [vmem:[#allocation2 + $0x20] sm:$0xff] %v656
    %974 = vst [vmem:[#allocation2 + $0x28] sm:$0xff] %v760
    %975 = vst [vmem:[#allocation2 + $0x30] sm:$0xff] %v864
    %976 = vst [vmem:[#allocation2 + $0x38] sm:$0xff] %v968
    // Predicated region
    $region18: #{tpu_custom_call.1} parent=1 // pred_check
      _
    $region19: #{tpu_custom_call.1} parent=1 // pred_check_branch
      %978 = sbr.rel (0) target = $region21
    $region20: #{tpu_custom_call.1} parent=1 // pred_region
      %s980 = ssub.s32 1024, 1024
      %981 = vsyncadd [#allocation3], %s980
      %s982 = sshll.u32 [#allocation2], 4
      %s983 = int_to_ptr.vmem [resolvable:$true] %s982
      %988 = dma.vmem_to_hbm [thread:$0]  %s983, 1024, %s4, [#allocation3], 256, 256, 16
    $region21: #{tpu_custom_call.1} parent=1 // pred_fallthru
      _
    // Predicated region
    $region22: #{tpu_custom_call.1} parent=1 // pred_check
      _
    $region23: #{tpu_custom_call.1} parent=1 // pred_check_branch
      %990 = sbr.rel (0) target = $region25
    $region24: #{tpu_custom_call.1} parent=1 // pred_region
      %991 = dma.done [#allocation3], 1024
    $region25: #{tpu_custom_call.1} parent=1 // pred_fallthru
      _
    %992 = vsyncpa [#allocation3], 1

</llo_original>
